<compile_context>
chip_gen: v7x
topology: tpu7x:2x2x1
jax: 0.10.0
libtpu: 0.0.40
codegen_flags: <defaults>
</compile_context>

<pallas_src>
import jax
import jax.numpy as jnp
from jax.experimental import pallas as pl
from jax.experimental.pallas import tpu as pltpu


def _round_up(x, m):
    return (x + m - 1) // m * m


def chess_mlp_kernel(board_ref, scal_ref, w1a_ref, w1b_ref, b1_ref,
                     w2_ref, b2_ref, w3_ref, b3_ref, o_ref):
    # In-kernel bf16 cast (VPU, hidden under DMA in this HBM-bound regime).
    board_bf = board_ref[...].astype(jnp.bfloat16)
    scal_bf = scal_ref[...].astype(jnp.bfloat16)

    # ---- layer 1: fused concat -> two MXU matmuls, f32 accumulation ---------
    h1 = jnp.dot(board_bf, w1a_ref[...], preferred_element_type=jnp.float32)
    h1 = h1 + jnp.dot(scal_bf, w1b_ref[...], preferred_element_type=jnp.float32)
    h1 = jnp.maximum(h1 + b1_ref[...], 0.0)          # bias + ReLU in f32 (VPU)

    # ---- layer 2: bf16 MXU inputs, f32 accumulate, f32 epilogue -------------
    h2 = jnp.dot(h1.astype(jnp.bfloat16), w2_ref[...],
                 preferred_element_type=jnp.float32)
    h2 = jnp.maximum(h2 + b2_ref[...], 0.0)

    # ---- layer 3 (out_features == 1) ----------------------------------------
    # VPU multiply + lane reduce instead of a nearly-empty N=1 MXU pass; the
    # result stays sublane-major and is stored as a plain (tb, 1) block.
    val = jnp.sum(h2 * w3_ref[...], axis=1, keepdims=True)   # (tb, 1) f32
    o_ref[...] = (val + b3_ref[...]).astype(o_ref.dtype)


def chess_model_forward(board, scalar_features, params, *, batch_tile=2048):
    """Pallas equivalent of ChessModel.forward.

    board:            (B, board_size)   float32
    scalar_features:  (B, scalar_size)  float32
    returns:          (B, 1)            float32
    """
    w1, b1, w2, b2, w3, b3 = params            # (in, out) weights, (1, out) biases
    B, board_size = board.shape
    scalar_size = scalar_features.shape[1]
    h0 = w1.shape[1]
    h1d = w2.shape[1]

    # Split W1 row-wise so the concat fuses into the kernel (weights are tiny:
    # one-time bf16 cast of ~11 KB is negligible).
    w1a = w1[:board_size].astype(jnp.bfloat16)
    w1b = w1[board_size:].astype(jnp.bfloat16)
    w2c = w2.astype(jnp.bfloat16)
    # Layer-3 weights feed the VPU only -> keep f32 (important on v5e).
    w3_row = w3.reshape(1, h1d).astype(jnp.float32)
    b3c = b3.reshape(1, 1).astype(jnp.float32)
    b1c = b1.astype(jnp.float32)
    b2c = b2.astype(jnp.float32)

    # Batch tile: multiple of 128 once the batch is large, multiple of 8
    # otherwise.  No padding of the activations -- grid handles the ragged
    # last tile (out-of-bounds output rows are masked by Pallas).
    tb = max(8, min(batch_tile, _round_up(B, 8)))
    tb = _round_up(tb, 128) if tb >= 128 else _round_up(tb, 8)
    num_tiles = pl.cdiv(B, tb)

    batch_map = lambda i: (i, 0)
    const_map = lambda i: (0, 0)    # weights/biases: same block every step -> resident

    grid_spec = pltpu.PrefetchScalarGridSpec(
        num_scalar_prefetch=0,
        grid=(num_tiles,),
        in_specs=[
            pl.BlockSpec((tb, board_size), batch_map),
            pl.BlockSpec((tb, scalar_size), batch_map),
            pl.BlockSpec((board_size, h0), const_map),
            pl.BlockSpec((scalar_size, h0), const_map),
            pl.BlockSpec((1, h0), const_map),
            pl.BlockSpec((h0, h1d), const_map),
            pl.BlockSpec((1, h1d), const_map),
            pl.BlockSpec((1, h1d), const_map),
            pl.BlockSpec((1, 1), const_map),
        ],
        out_specs=pl.BlockSpec((tb, 1), batch_map),
    )

    out = pl.pallas_call(
        chess_mlp_kernel,
        out_shape=jax.ShapeDtypeStruct((B, 1), jnp.float32),
        grid_spec=grid_spec,
        compiler_params=pltpu.CompilerParams(
            dimension_semantics=("parallel",),      # both TCs on v7x
            vmem_limit_bytes=32 * 1024 * 1024),     # covers large tiles on v5e too
    )(board, scalar_features, w1a, w1b, b1c, w2c, b2c, w3_row, b3c)

    return out


def init_params(key, input_size, hidden_size):
    """Deterministic synthetic parameters matching nn.Linear shapes.

    Weights are created in (in, out) layout (transposed relative to PyTorch's
    (out, in) storage); biases are (1, out) rows."""
    h0, h1 = hidden_size
    k1, k2, k3, k4, k5, k6 = jax.random.split(key, 6)

    def unif(k, shape, fan_in):
        bound = 1.0 / jnp.sqrt(fan_in)
        return jax.random.uniform(k, shape, jnp.float32, -bound, bound)

    w1 = unif(k1, (input_size, h0), input_size)
    b1 = unif(k2, (1, h0), input_size)
    w2 = unif(k3, (h0, h1), h0)
    b2 = unif(k4, (1, h1), h0)
    w3 = unif(k5, (h1, 1), h1)
    b3 = unif(k6, (1, 1), h1)
    return (w1, b1, w2, b2, w3, b3)


def reference_forward(board, scalar_features, params):
    """Pure-JAX f32 reference matching the PyTorch module."""
    w1, b1, w2, b2, w3, b3 = params
    x = jnp.concatenate([board, scalar_features], axis=1)
    x = jnp.maximum(x @ w1 + b1, 0.0)
    x = jnp.maximum(x @ w2 + b2, 0.0)
    return x @ w3 + b3


if __name__ == "__main__":
    # Small shapes consistent with the module: a flattened 8x8 board plus a
    # few scalar features per position.
    batch = 8
    board_size = 64
    scalar_size = 8
    hidden_size = (32, 16)
    input_size = board_size + scalar_size

    key = jax.random.PRNGKey(0)
    k_board, k_scalar, k_params = jax.random.split(key, 3)

    board = jax.random.normal(k_board, (batch, board_size), jnp.float32)
    scalar_features = jax.random.normal(k_scalar, (batch, scalar_size), jnp.float32)
    params = init_params(k_params, input_size, hidden_size)

    out = chess_model_forward(board, scalar_features, params)
    out = jax.block_until_ready(out)
    ref = reference_forward(board, scalar_features, params)
    assert out.shape == (batch, 1), out.shape
    # bf16 MXU inputs with f32 accumulation -> small rounding vs f32 reference.
    assert jnp.allclose(out, ref, atol=5e-2, rtol=5e-2), (
        "mismatch vs reference", float(jnp.max(jnp.abs(out - ref))))

    # Exercise the multi-tile grid + ragged last tile (3 tiles of 128 rows,
    # B=300 -> last tile rows 256..383 masked on store, no input padding pass).
    big_batch = 300
    kb2, ks2 = jax.random.split(jax.random.PRNGKey(1), 2)
    board2 = jax.random.normal(kb2, (big_batch, board_size), jnp.float32)
    scal2 = jax.random.normal(ks2, (big_batch, scalar_size), jnp.float32)
    out2 = jax.block_until_ready(
        chess_model_forward(board2, scal2, params, batch_tile=128))
    ref2 = reference_forward(board2, scal2, params)
    assert out2.shape == (big_batch, 1), out2.shape
    assert jnp.allclose(out2, ref2, atol=5e-2, rtol=5e-2), (
        "mismatch vs reference (batched)",
        float(jnp.max(jnp.abs(out2 - ref2))))

    print("KERNEL_OK")
</pallas_src>

<mosaic_0001>
module attributes {stable_mosaic.version = 11 : i64} {
  func.func @chess_mlp_kernel(%arg0: i32, %arg1: memref<8x64xf32, #tpu.memory_space<vmem>>, %arg2: memref<8x8xf32, #tpu.memory_space<vmem>>, %arg3: memref<64x32xbf16, #tpu.memory_space<vmem>>, %arg4: memref<8x32xbf16, #tpu.memory_space<vmem>>, %arg5: memref<1x32xf32, #tpu.memory_space<vmem>>, %arg6: memref<32x16xbf16, #tpu.memory_space<vmem>>, %arg7: memref<1x16xf32, #tpu.memory_space<vmem>>, %arg8: memref<1x16xf32, #tpu.memory_space<vmem>>, %arg9: memref<1x1xf32, #tpu.memory_space<vmem>>, %arg10: memref<8x1xf32, #tpu.memory_space<vmem>>) attributes {dimension_semantics = [#tpu.dimension_semantics<parallel>], iteration_bounds = array<i64: 1>, scalar_prefetch = 0 : i64, scratch_operands = 0 : i64, tpu.core_type = #tpu.core_type<tc>, window_params = [{transform_indices = @transform_0, window_bounds = array<i64: 8, 64>}, {transform_indices = @transform_1, window_bounds = array<i64: 8, 8>}, {pipeline_mode = #tpu.pipeline_mode<synchronous>, transform_indices = @transform_2, window_bounds = array<i64: 64, 32>}, {pipeline_mode = #tpu.pipeline_mode<synchronous>, transform_indices = @transform_3, window_bounds = array<i64: 8, 32>}, {pipeline_mode = #tpu.pipeline_mode<synchronous>, transform_indices = @transform_4, window_bounds = array<i64: 1, 32>}, {pipeline_mode = #tpu.pipeline_mode<synchronous>, transform_indices = @transform_5, window_bounds = array<i64: 32, 16>}, {pipeline_mode = #tpu.pipeline_mode<synchronous>, transform_indices = @transform_6, window_bounds = array<i64: 1, 16>}, {pipeline_mode = #tpu.pipeline_mode<synchronous>, transform_indices = @transform_7, window_bounds = array<i64: 1, 16>}, {pipeline_mode = #tpu.pipeline_mode<synchronous>, transform_indices = @transform_8, window_bounds = array<i64: 1, 1>}, {transform_indices = @transform_9, window_bounds = array<i64: 8, 1>}]} {
    %c0 = arith.constant 0 : index
    %c0_0 = arith.constant 0 : index
    %0 = vector.load %arg1[%c0, %c0_0] : memref<8x64xf32, #tpu.memory_space<vmem>>, vector<8x64xf32>
    %1 = arith.truncf %0 : vector<8x64xf32> to vector<8x64xbf16>
    %c0_1 = arith.constant 0 : index
    %c0_2 = arith.constant 0 : index
    %2 = vector.load %arg2[%c0_1, %c0_2] : memref<8x8xf32, #tpu.memory_space<vmem>>, vector<8x8xf32>
    %3 = arith.truncf %2 : vector<8x8xf32> to vector<8x8xbf16>
    %c0_3 = arith.constant 0 : index
    %c0_4 = arith.constant 0 : index
    %4 = vector.load %arg3[%c0_3, %c0_4] : memref<64x32xbf16, #tpu.memory_space<vmem>>, vector<64x32xbf16>
    %cst = arith.constant dense<0.000000e+00> : vector<8x32xf32>
    %5 = tpu.matmul %1, %4, %cst {dimension_numbers = #tpu.dot_dimension_numbers<[1], [0], [0], [1], [0, 0, 1, 1], [], []>} : vector<8x64xbf16>, vector<64x32xbf16>, vector<8x32xf32> -> vector<8x32xf32>
    %c0_5 = arith.constant 0 : index
    %c0_6 = arith.constant 0 : index
    %6 = vector.load %arg4[%c0_5, %c0_6] : memref<8x32xbf16, #tpu.memory_space<vmem>>, vector<8x32xbf16>
    %cst_7 = arith.constant dense<0.000000e+00> : vector<8x32xf32>
    %7 = tpu.matmul %3, %6, %cst_7 {dimension_numbers = #tpu.dot_dimension_numbers<[1], [0], [0], [1], [0, 0, 1, 1], [], []>} : vector<8x8xbf16>, vector<8x32xbf16>, vector<8x32xf32> -> vector<8x32xf32>
    %8 = arith.addf %5, %7 : vector<8x32xf32>
    %c0_8 = arith.constant 0 : index
    %c0_9 = arith.constant 0 : index
    %9 = vector.load %arg5[%c0_8, %c0_9] : memref<1x32xf32, #tpu.memory_space<vmem>>, vector<1x32xf32>
    %10 = vector.broadcast %9 : vector<1x32xf32> to vector<8x32xf32>
    %11 = arith.addf %8, %10 : vector<8x32xf32>
    %cst_10 = arith.constant 0.000000e+00 : f32
    %12 = vector.broadcast %cst_10 : f32 to vector<8x32xf32>
    %13 = arith.maximumf %11, %12 : vector<8x32xf32>
    %14 = arith.truncf %13 : vector<8x32xf32> to vector<8x32xbf16>
    %c0_11 = arith.constant 0 : index
    %c0_12 = arith.constant 0 : index
    %15 = vector.load %arg6[%c0_11, %c0_12] : memref<32x16xbf16, #tpu.memory_space<vmem>>, vector<32x16xbf16>
    %cst_13 = arith.constant dense<0.000000e+00> : vector<8x16xf32>
    %16 = tpu.matmul %14, %15, %cst_13 {dimension_numbers = #tpu.dot_dimension_numbers<[1], [0], [0], [1], [0, 0, 1, 1], [], []>} : vector<8x32xbf16>, vector<32x16xbf16>, vector<8x16xf32> -> vector<8x16xf32>
    %c0_14 = arith.constant 0 : index
    %c0_15 = arith.constant 0 : index
    %17 = vector.load %arg7[%c0_14, %c0_15] : memref<1x16xf32, #tpu.memory_space<vmem>>, vector<1x16xf32>
    %18 = vector.broadcast %17 : vector<1x16xf32> to vector<8x16xf32>
    %19 = arith.addf %16, %18 : vector<8x16xf32>
    %cst_16 = arith.constant 0.000000e+00 : f32
    %20 = vector.broadcast %cst_16 : f32 to vector<8x16xf32>
    %21 = arith.maximumf %19, %20 : vector<8x16xf32>
    %c0_17 = arith.constant 0 : index
    %c0_18 = arith.constant 0 : index
    %22 = vector.load %arg8[%c0_17, %c0_18] : memref<1x16xf32, #tpu.memory_space<vmem>>, vector<1x16xf32>
    %23 = vector.broadcast %22 : vector<1x16xf32> to vector<8x16xf32>
    %24 = arith.mulf %21, %23 : vector<8x16xf32>
    %cst_19 = arith.constant dense<0.000000e+00> : vector<8xf32>
    %25 = vector.multi_reduction <add>, %24, %cst_19 [1] : vector<8x16xf32> to vector<8xf32>
    %26 = vector.shape_cast %25 : vector<8xf32> to vector<8x1xf32>
    %c0_20 = arith.constant 0 : index
    %c0_21 = arith.constant 0 : index
    %27 = vector.load %arg9[%c0_20, %c0_21] : memref<1x1xf32, #tpu.memory_space<vmem>>, vector<1x1xf32>
    %28 = vector.broadcast %27 : vector<1x1xf32> to vector<8x1xf32>
    %29 = arith.addf %26, %28 : vector<8x1xf32>
    %c0_22 = arith.constant 0 : index
    %c0_23 = arith.constant 0 : index
    %30 = vector.load %arg10[%c0_22, %c0_23] : memref<8x1xf32, #tpu.memory_space<vmem>>, vector<8x1xf32>
    tpu.vector_store %arg10[%c0_22, %c0_23], %29 {strides = array<i32>} : memref<8x1xf32, #tpu.memory_space<vmem>>, vector<8x1xf32>,
    return
  }
  func.func @transform_0(%arg0: i32) -> (i32, i32) {
    %c0_i32 = arith.constant 0 : i32
    %c0_i32_0 = arith.constant 0 : i32
    return %arg0, %c0_i32 : i32, i32
  }
  func.func @transform_1(%arg0: i32) -> (i32, i32) {
    %c0_i32 = arith.constant 0 : i32
    %c0_i32_0 = arith.constant 0 : i32
    return %arg0, %c0_i32 : i32, i32
  }
  func.func @transform_2(%arg0: i32) -> (i32, i32) {
    %c0_i32 = arith.constant 0 : i32
    %c0_i32_0 = arith.constant 0 : i32
    %c0_i32_1 = arith.constant 0 : i32
    return %c0_i32, %c0_i32_0 : i32, i32
  }
  func.func @transform_3(%arg0: i32) -> (i32, i32) {
    %c0_i32 = arith.constant 0 : i32
    %c0_i32_0 = arith.constant 0 : i32
    %c0_i32_1 = arith.constant 0 : i32
    return %c0_i32, %c0_i32_0 : i32, i32
  }
  func.func @transform_4(%arg0: i32) -> (i32, i32) {
    %c0_i32 = arith.constant 0 : i32
    %c0_i32_0 = arith.constant 0 : i32
    %c0_i32_1 = arith.constant 0 : i32
    return %c0_i32, %c0_i32_0 : i32, i32
  }
  func.func @transform_5(%arg0: i32) -> (i32, i32) {
    %c0_i32 = arith.constant 0 : i32
    %c0_i32_0 = arith.constant 0 : i32
    %c0_i32_1 = arith.constant 0 : i32
    return %c0_i32, %c0_i32_0 : i32, i32
  }
  func.func @transform_6(%arg0: i32) -> (i32, i32) {
    %c0_i32 = arith.constant 0 : i32
    %c0_i32_0 = arith.constant 0 : i32
    %c0_i32_1 = arith.constant 0 : i32
    return %c0_i32, %c0_i32_0 : i32, i32
  }
  func.func @transform_7(%arg0: i32) -> (i32, i32) {
    %c0_i32 = arith.constant 0 : i32
    %c0_i32_0 = arith.constant 0 : i32
    %c0_i32_1 = arith.constant 0 : i32
    return %c0_i32, %c0_i32_0 : i32, i32
  }
  func.func @transform_8(%arg0: i32) -> (i32, i32) {
    %c0_i32 = arith.constant 0 : i32
    %c0_i32_0 = arith.constant 0 : i32
    %c0_i32_1 = arith.constant 0 : i32
    return %c0_i32, %c0_i32_0 : i32, i32
  }
  func.func @transform_9(%arg0: i32) -> (i32, i32) {
    %c0_i32 = arith.constant 0 : i32
    %c0_i32_0 = arith.constant 0 : i32
    return %arg0, %c0_i32 : i32, i32
  }
}

</mosaic_0001>

<llo_original>
// kernel: tpu_custom_call.1
$region0: #{tpu_custom_call.1}
  #allocation0 [shape = 'u32[]', space=smem, size = 0x4, offset = 0x4, fixed_abs, tag = 'smem constant byte address 0x4 - core index']
  #allocation1 [shape = 'u32[144,128]{1,0:T(1,128)}', space=vmem, size = 0x12000, scoped, tag = 'internal scratch']
  #allocation2 [shape = 'f32[1,1]{1,0:T(1,128)S(1)}', space=vmem, size = 0x200, scoped, tag = 'scoped memory for tpu_custom_call.1']
  %s0 = inlined_call_operand.vmem [shape: f32[8,64], index: 0, kind: input, shape index: {}]
  %s1 = inlined_call_operand.vmem [shape: f32[8,8], index: 1, kind: input, shape index: {}]
  %s2 = inlined_call_operand.vmem [shape: bf16[64,32], index: 2, kind: input, shape index: {}]
  %s3 = inlined_call_operand.vmem [shape: bf16[8,32], index: 3, kind: input, shape index: {}]
  %s4 = inlined_call_operand.vmem [shape: f32[1,32], index: 4, kind: input, shape index: {}]
  %s5 = inlined_call_operand.vmem [shape: bf16[32,16], index: 5, kind: input, shape index: {}]
  %s6 = inlined_call_operand.vmem [shape: f32[1,16], index: 6, kind: input, shape index: {}]
  %s7 = inlined_call_operand.vmem [shape: f32[1,16], index: 7, kind: input, shape index: {}]
  %s8 = inlined_call_operand.<no memory space> [shape: f32[1,1], index: 8, kind: input, shape index: {}]
  %s9 = inlined_call_operand.vmem [shape: f32[8,1], index: 9, kind: output, shape index: {}]
  %s10 = sld [smem:[#allocation0]]
  $region46: #{tpu_custom_call.1} parent=0
    _
  %s12 = ssub.s32 1, %s10
  %s13 = scalar_select 0, %s12, %s10
  %v14 = vstv %s8
  %15 = vst [vmem:[#allocation2] sm:$0x1] %v14
  // Predicated region
  $region2: #{tpu_custom_call.1} parent=0 // pred_check
    _
  $region3: #{tpu_custom_call.1} parent=0 // pred_check_branch
    %17 = sbr.rel (0) target = $region5
  $region4: #{tpu_custom_call.1} parent=0 // pred_region
    _
  $region5: #{tpu_custom_call.1} parent=0 // pred_fallthru
    _
  // Predicated region
  $region6: #{tpu_custom_call.1} parent=0 // pred_check
    _
  $region7: #{tpu_custom_call.1} parent=0 // pred_check_branch
    %19 = sbr.rel (0) target = $region9
  $region8: #{tpu_custom_call.1} parent=0 // pred_region
    _
  $region9: #{tpu_custom_call.1} parent=0 // pred_fallthru
    _
  // Predicated region
  $region10: #{tpu_custom_call.1} parent=0 // pred_check
    _
  $region11: #{tpu_custom_call.1} parent=0 // pred_check_branch
    %21 = sbr.rel (0) target = $region13
  $region12: #{tpu_custom_call.1} parent=0 // pred_region
    _
  $region13: #{tpu_custom_call.1} parent=0 // pred_fallthru
    _
  // Predicated region
  $region14: #{tpu_custom_call.1} parent=0 // pred_check
    _
  $region15: #{tpu_custom_call.1} parent=0 // pred_check_branch
    %23 = sbr.rel (0) target = $region17
  $region16: #{tpu_custom_call.1} parent=0 // pred_region
    _
  $region17: #{tpu_custom_call.1} parent=0 // pred_fallthru
    _
  // Predicated region
  $region18: #{tpu_custom_call.1} parent=0 // pred_check
    _
  $region19: #{tpu_custom_call.1} parent=0 // pred_check_branch
    %25 = sbr.rel (0) target = $region21
  $region20: #{tpu_custom_call.1} parent=0 // pred_region
    _
  $region21: #{tpu_custom_call.1} parent=0 // pred_fallthru
    _
  // Predicated region
  $region22: #{tpu_custom_call.1} parent=0 // pred_check
    _
  $region23: #{tpu_custom_call.1} parent=0 // pred_check_branch
    %27 = sbr.rel (0) target = $region25
  $region24: #{tpu_custom_call.1} parent=0 // pred_region
    _
  $region25: #{tpu_custom_call.1} parent=0 // pred_fallthru
    _
  // Predicated region
  $region26: #{tpu_custom_call.1} parent=0 // pred_check
    _
  $region27: #{tpu_custom_call.1} parent=0 // pred_check_branch
    %29 = sbr.rel (0) target = $region29
  $region28: #{tpu_custom_call.1} parent=0 // pred_region
    _
  $region29: #{tpu_custom_call.1} parent=0 // pred_fallthru
    _
  // Predicated region
  $region30: #{tpu_custom_call.1} parent=0 // pred_check
    _
  $region31: #{tpu_custom_call.1} parent=0 // pred_check_branch
    %31 = sbr.rel (0) target = $region33
  $region32: #{tpu_custom_call.1} parent=0 // pred_region
    _
  $region33: #{tpu_custom_call.1} parent=0 // pred_fallthru
    _
  // Predicated region
  $region34: #{tpu_custom_call.1} parent=0 // pred_check
    _
  $region35: #{tpu_custom_call.1} parent=0 // pred_check_branch
    %33 = sbr.rel (0) target = $region37
  $region36: #{tpu_custom_call.1} parent=0 // pred_region
    _
  $region37: #{tpu_custom_call.1} parent=0 // pred_fallthru
    _
  %v35 = vld [vmem:[%s0] sm:$0xff]
  %v36 = vpack.c.bf16 %v35, %v35
  %v37 = vld [vmem:[%s1] sm:$0xff]
  %v38 = vpack.c.bf16 %v37, %v37
  %v39 = vld [vmem:[%s2] sm:$0xf]
  %v40 = vld [vmem:[%s2 + $0x4] sm:$0xf]
  %v41 = vld [vmem:[%s2 + $0x8] sm:$0xf]
  %v42 = vld [vmem:[%s2 + $0xc] sm:$0xf]
  %v43 = vld [vmem:[%s2 + $0x10] sm:$0xf]
  %v44 = vld [vmem:[%s2 + $0x14] sm:$0xf]
  %v45 = vld [vmem:[%s2 + $0x18] sm:$0xf]
  %v46 = vld [vmem:[%s2 + $0x1c] sm:$0xf]
  %v47 = vld [vmem:[%s3] sm:$0xf]
  %vm48 = vcmask 64512
  %v50 = vsel %vm48, %v38, 0
  %vm52 = vcmask 1043456
  %v54 = vsel %vm52, %v47, 0
  %56 = vmatprep.subr.bf16.mxu0 0
  %57 = vmatpush1.bf16.msra.mxu0 %v54
  %58 = vmatprep.subr.bf16.mxu0 0
  %59 = vmatpush1.bf16.msra.mxu0 0
  %60 = vmatprep.subr.bf16.mxu0 0
  %61 = vmatpush1.bf16.msra.mxu0 0
  %62 = vmatprep.subr.bf16.mxu0 0
  %63 = vmatpush1.bf16.msra.mxu0 0
  %64 = vmatprep.subr.bf16.mxu0 0
  %65 = vmatpush1.bf16.msra.mxu0 0
  %66 = vmatprep.subr.bf16.mxu0 0
  %67 = vmatpush1.bf16.msra.mxu0 0
  %68 = vmatprep.subr.bf16.mxu0 0
  %69 = vmatpush1.bf16.msra.mxu0 0
  %70 = vmatprep.subr.bf16.mxu0 0
  %71 = vmatpush1.bf16.msra.mxu0 0
  %72 = vmatprep.subr.bf16.mxu0 0
  %73 = vmatpush1.bf16.msra.mxu0 0
  %74 = vmatprep.subr.bf16.mxu0 0
  %75 = vmatpush1.bf16.msra.mxu0 0
  %76 = vmatprep.subr.bf16.mxu0 0
  %77 = vmatpush1.bf16.msra.mxu0 0
  %78 = vmatprep.subr.bf16.mxu0 0
  %79 = vmatpush1.bf16.msra.mxu0 0
  %80 = vmatprep.subr.bf16.mxu0 0
  %81 = vmatpush1.bf16.msra.mxu0 0
  %82 = vmatprep.subr.bf16.mxu0 0
  %83 = vmatpush1.bf16.msra.mxu0 0
  %84 = vmatprep.subr.bf16.mxu0 0
  %85 = vmatpush1.bf16.msra.mxu0 0
  %86 = vmatprep.subr.bf16.mxu0 0
  %87 = vmatpush1.bf16.msra.mxu0 0
  %88 = vmatprep.mubr.bf16.mxu0 0
  %89 = vmatmul.mubr.bf16.gmra.mrb[0].mxu0 %v50
  %v90 = vpop.f32.mrb[0].mxu0
  %v91 = vadd.f32 0.0, %v90
  %v92 = vpop.f32.mrb[0].mxu0
  %v93 = vpop.f32.mrb[0].mxu0
  %v94 = vpop.f32.mrb[0].mxu0
  %95 = vdwg.mxu0
  %v104 = vunpack.c.l.b16 %v39
  %v105 = vunpack.c.l.b16 %v40
  %v106 = vunpack.c.l.b16 %v41
  %v107 = vunpack.c.l.b16 %v42
  %v108 = vunpack.c.l.b16 %v43
  %v109 = vunpack.c.l.b16 %v44
  %v110 = vunpack.c.l.b16 %v45
  %v111 = vunpack.c.l.b16 %v46
  %v112 = vpack.c.b16 %v105, %v104
  %v113 = vpack.c.b16 %v107, %v106
  %v114 = vpack.c.b16 %v109, %v108
  %v115 = vpack.c.b16 %v111, %v110
  %vm120 = vcmask 523264
  %v122 = vsel %vm120, %v36, 0
  %124 = vmatprep.subr.bf16.mxu0 0
  %125 = vmatpush1.bf16.msra.mxu0 %v112
  %126 = vmatprep.subr.bf16.mxu0 0
  %127 = vmatpush1.bf16.msra.mxu0 %v113
  %128 = vmatprep.subr.bf16.mxu0 0
  %129 = vmatpush1.bf16.msra.mxu0 %v114
  %130 = vmatprep.subr.bf16.mxu0 0
  %131 = vmatpush1.bf16.msra.mxu0 %v115
  %132 = vmatprep.subr.bf16.mxu0 0
  %133 = vmatpush1.bf16.msra.mxu0 0
  %134 = vmatprep.subr.bf16.mxu0 0
  %135 = vmatpush1.bf16.msra.mxu0 0
  %136 = vmatprep.subr.bf16.mxu0 0
  %137 = vmatpush1.bf16.msra.mxu0 0
  %138 = vmatprep.subr.bf16.mxu0 0
  %139 = vmatpush1.bf16.msra.mxu0 0
  %140 = vmatprep.subr.bf16.mxu0 0
  %141 = vmatpush1.bf16.msra.mxu0 0
  %142 = vmatprep.subr.bf16.mxu0 0
  %143 = vmatpush1.bf16.msra.mxu0 0
  %144 = vmatprep.subr.bf16.mxu0 0
  %145 = vmatpush1.bf16.msra.mxu0 0
  %146 = vmatprep.subr.bf16.mxu0 0
  %147 = vmatpush1.bf16.msra.mxu0 0
  %148 = vmatprep.subr.bf16.mxu0 0
  %149 = vmatpush1.bf16.msra.mxu0 0
  %150 = vmatprep.subr.bf16.mxu0 0
  %151 = vmatpush1.bf16.msra.mxu0 0
  %152 = vmatprep.subr.bf16.mxu0 0
  %153 = vmatpush1.bf16.msra.mxu0 0
  %154 = vmatprep.subr.bf16.mxu0 0
  %155 = vmatpush1.bf16.msra.mxu0 0
  %156 = vmatprep.mubr.bf16.mxu0 0
  %157 = vmatmul.mubr.bf16.gmra.mrb[0].mxu0 %v122
  %v158 = vpop.f32.mrb[0].mxu0
  %v159 = vadd.f32 %v91, %v158
  %v160 = vpop.f32.mrb[0].mxu0
  %v161 = vpop.f32.mrb[0].mxu0
  %v162 = vpop.f32.mrb[0].mxu0
  %163 = vdwg.mxu0
  %v164 = vld [vmem:[%s4] sm:$0x1]
  %v166 = vlaneseq
  %v167 = vshrl.u32 %v166, 7
  %v168 = vsub.s32 0, %v167
  %v169 = vrot.slane %v164, %v168
  %v171 = vadd.f32 %v159, %v169
  %v172 = vmax.f32 %v171, 0.0
  %v173 = vpack.c.bf16 %v172, %v172
  %v174 = vld [vmem:[%s5] sm:$0xf]
  %v175 = vld [vmem:[%s5 + $0x4] sm:$0xf]
  %v176 = vld [vmem:[%s5 + $0x8] sm:$0xf]
  %v177 = vld [vmem:[%s5 + $0xc] sm:$0xf]
  %v178 = vld [vmem:[%s6] sm:$0x1]
  %v180 = vlaneseq
  %v181 = vshrl.u32 %v180, 7
  %v182 = vsub.s32 0, %v181
  %v183 = vrot.slane %v178, %v182
  %v189 = vunpack.c.l.b16 %v174
  %v190 = vunpack.c.l.b16 %v175
  %v191 = vunpack.c.l.b16 %v176
  %v192 = vunpack.c.l.b16 %v177
  %v193 = vpack.c.b16 %v190, %v189
  %v194 = vpack.c.b16 %v192, %v191
  %vm197 = vcmask 261120
  %v199 = vsel %vm197, %v173, 0
  %201 = vmatprep.subr.bf16.mxu0 0
  %202 = vmatpush1.bf16.msra.mxu0 %v193
  %203 = vmatprep.subr.bf16.mxu0 0
  %204 = vmatpush1.bf16.msra.mxu0 %v194
  %205 = vmatprep.subr.bf16.mxu0 0
  %206 = vmatpush1.bf16.msra.mxu0 0
  %207 = vmatprep.subr.bf16.mxu0 0
  %208 = vmatpush1.bf16.msra.mxu0 0
  %209 = vmatprep.subr.bf16.mxu0 0
  %210 = vmatpush1.bf16.msra.mxu0 0
  %211 = vmatprep.subr.bf16.mxu0 0
  %212 = vmatpush1.bf16.msra.mxu0 0
  %213 = vmatprep.subr.bf16.mxu0 0
  %214 = vmatpush1.bf16.msra.mxu0 0
  %215 = vmatprep.subr.bf16.mxu0 0
  %216 = vmatpush1.bf16.msra.mxu0 0
  %217 = vmatprep.subr.bf16.mxu0 0
  %218 = vmatpush1.bf16.msra.mxu0 0
  %219 = vmatprep.subr.bf16.mxu0 0
  %220 = vmatpush1.bf16.msra.mxu0 0
  %221 = vmatprep.subr.bf16.mxu0 0
  %222 = vmatpush1.bf16.msra.mxu0 0
  %223 = vmatprep.subr.bf16.mxu0 0
  %224 = vmatpush1.bf16.msra.mxu0 0
  %225 = vmatprep.subr.bf16.mxu0 0
  %226 = vmatpush1.bf16.msra.mxu0 0
  %227 = vmatprep.subr.bf16.mxu0 0
  %228 = vmatpush1.bf16.msra.mxu0 0
  %229 = vmatprep.subr.bf16.mxu0 0
  %230 = vmatpush1.bf16.msra.mxu0 0
  %231 = vmatprep.subr.bf16.mxu0 0
  %232 = vmatpush1.bf16.msra.mxu0 0
  %233 = vmatprep.mubr.bf16.mxu0 0
  %234 = vmatmul.mubr.bf16.gmra.mrb[0].mxu0 %v199
  %v235 = vpop.f32.mrb[0].mxu0
  %v236 = vadd.f32 %v183, %v235
  %v237 = vpop.f32.mrb[0].mxu0
  %v238 = vpop.f32.mrb[0].mxu0
  %v239 = vpop.f32.mrb[0].mxu0
  %240 = vdwg.mxu0
  %v241 = vmax.f32 %v236, 0.0
  %v242 = vld [vmem:[%s7] sm:$0x1]
  %v244 = vlaneseq
  %v245 = vshrl.u32 %v244, 7
  %v246 = vsub.s32 0, %v245
  %v247 = vrot.slane %v242, %v246
  %v249 = vmul.f32 %v241, %v247
  %vm250 = vcmask 130048
  %v251 = vsel %vm250, %v249, 0.0
  %252 = vadd.xlane.f32.xlu0 %v251
  %v253 = vpop.xlane.xlu0 %252
  %v254 = vld [vmem:[#allocation2] sm:$0x1]
  %v256 = vlaneseq
  %v257 = vshrl.u32 %v256, 7
  %v258 = vsub.s32 0, %v257
  %v259 = vrot.slane %v254, %v258
  %v261 = vadd.f32 %v253, %v259
  %vm262 = vcmask 7168
  %263 = vst.msk [vmem:[%s9] sm:$0xff] %vm262, %v261
  // Predicated region
  $region38: #{tpu_custom_call.1} parent=0 // pred_check
    _
  $region39: #{tpu_custom_call.1} parent=0 // pred_check_branch
    %265 = sbr.rel (0) target = $region41
  $region40: #{tpu_custom_call.1} parent=0 // pred_region
    _
  $region41: #{tpu_custom_call.1} parent=0 // pred_fallthru
    _
  // Predicated region
  $region42: #{tpu_custom_call.1} parent=0 // pred_check
    _
  $region43: #{tpu_custom_call.1} parent=0 // pred_check_branch
    %267 = sbr.rel (0) target = $region45
  $region44: #{tpu_custom_call.1} parent=0 // pred_region
    _
  $region45: #{tpu_custom_call.1} parent=0 // pred_fallthru
    _

</llo_original>
